<compile_context>
chip_gen: v5e
topology: v5e:2x2
jax: 0.10.0
libtpu: 0.0.40
codegen_flags: <defaults>
</compile_context>

<pallas_src>
import functools

import jax
import jax.numpy as jnp
from jax import lax
from jax.experimental import pallas as pl
from jax.experimental.pallas import tpu as pltpu


def _round_up(n, m):
    return ((n + m - 1) // m) * m


def _vmem_capacity_bytes():
    # Hardware query only (not kernel lowering). Fall back to the smallest per-TC
    # VMEM across supported generations (v7x: 64 MiB) if the query is unavailable.
    try:
        return int(pltpu.get_tpu_info().vmem_capacity_bytes)
    except Exception:
        return 64 * 2**20


def _pick_tk(C):
    # Largest lane-aligned chunk (multiple of 128) that divides C, else full C
    # (a full-extent block is always a legal BlockSpec).
    for cand in (512, 384, 256, 128):
        if C % cand == 0:
            return cand
    return C


def _resblock_kernel(x_ref, g_ref, beta_ref, w1_ref, b1_ref, w2_ref, b2_ref,
                     o_ref, xn_ref, acc_ref, *, eps, approximate_gelu):
    k = pl.program_id(1)

    # --- once per row tile: LayerNorm (f32 stats) into scratch, zero the accumulator ---
    @pl.when(k == 0)
    def _():
        x = x_ref[...].astype(jnp.float32)                         # (tm, C)
        mean = jnp.mean(x, axis=-1, keepdims=True)
        centered = x - mean
        var = jnp.mean(centered * centered, axis=-1, keepdims=True)
        xn_ref[...] = (centered * lax.rsqrt(var + eps)) * g_ref[...] + beta_ref[...]
        acc_ref[...] = jnp.zeros_like(acc_ref)

    # --- hidden chunk k: Linear1 slab -> GELU -> Linear2 slab, f32 accumulation ---
    h = jnp.dot(xn_ref[...].astype(jnp.bfloat16), w1_ref[...],
                preferred_element_type=jnp.float32) + b1_ref[...]  # (tm, tk)
    if approximate_gelu:
        h = jax.nn.gelu(h, approximate=True)                       # tanh -> EUP slot
    else:
        # exact erf-based GELU, matching nn.GELU() default
        h = 0.5 * h * (1.0 + lax.erf(h * 0.7071067811865476))
    acc_ref[...] += jnp.dot(h.astype(jnp.bfloat16), w2_ref[...],
                            preferred_element_type=jnp.float32)    # (tm, C)

    # --- once per row tile: residual + second bias, store ---
    @pl.when(k == pl.num_programs(1) - 1)
    def _():
        o_ref[...] = (xn_ref[...] + acc_ref[...] + b2_ref[...]).astype(o_ref.dtype)


def simple_res_block(x, params, *, eps=1e-5, tm=None, tk=None, approximate_gelu=False):
    """x: (B, S, C) channels-last. params: dict of LayerNorm / Linear weights."""
    B, S, C = x.shape
    M = B * S
    x2 = x.reshape(M, C)

    cap = _vmem_capacity_bytes()

    # Hidden-dim chunk width.
    if tk is None:
        tk = _pick_tk(C)
    assert C % tk == 0 and (tk % 128 == 0 or tk == C), \
        "tk must divide C and be lane-aligned (multiple of 128) or equal C"

    # Row tile: big enough that per-row-tile weight re-reads hide behind the MXU,
    # small enough to fit VMEM (v7x: 64 MiB/TC), with >= 2 row tiles when M allows
    # so megacore can shard rows across TensorCores.
    if tm is None:
        tm = 512 if cap >= 100 * 2**20 else 256   # v5e/v6e (128 MiB) vs v7x (64 MiB)
    tm = max(8, min(tm, _round_up(M, 8)))
    if pl.cdiv(M, tm) < 2 and M > 8:
        tm = max(8, _round_up(pl.cdiv(M, 2), 8))

    # One-time parameter prep (no per-grid-step casts of constant-index blocks in-kernel).
    gamma = params["ln_gamma"].reshape(1, C).astype(jnp.float32)
    beta = params["ln_beta"].reshape(1, C).astype(jnp.float32)
    # PyTorch Linear stores weight as (out, in) and computes x @ W.T + b.
    w1 = params["w1"].T.astype(jnp.bfloat16)                       # (C, C): x @ w1
    b1 = params["b1"].reshape(1, C).astype(jnp.float32)
    w2 = params["w2"].T.astype(jnp.bfloat16)                       # (C, C)
    b2 = params["b2"].reshape(1, C).astype(jnp.float32)

    grid = (pl.cdiv(M, tm), C // tk)

    # VMEM budget estimate, clamped to the device's real capacity.
    itemsize = jnp.dtype(x.dtype).itemsize
    est = (4 * tm * C * itemsize               # x & out row tiles (2x buffered each)
           + 8 * C * tk                        # w1 (C,tk) + w2 (tk,C) bf16, 2x buffered
           + 2 * tm * C * 4                    # xn + acc f32 scratch
           + 2 * (3 * C + tk) * 4              # gamma/beta/b2 + b1 chunk (2x buffered)
           + 2 * tm * C + 4 * tm * tk * 4)     # bf16 xn cast + h/GELU intermediates
    vmem_limit = int(min(cap - 2 * 2**20, max(32 * 2**20, est + est // 4)))

    out = pl.pallas_call(
        functools.partial(_resblock_kernel, eps=eps,
                          approximate_gelu=approximate_gelu),
        out_shape=jax.ShapeDtypeStruct((M, C), x.dtype),
        grid_spec=pltpu.PrefetchScalarGridSpec(
            num_scalar_prefetch=0,
            grid=grid,
            in_specs=[
                pl.BlockSpec((tm, C), lambda i, k: (i, 0)),    # x row tile (constant in k)
                pl.BlockSpec((1, C), lambda i, k: (0, 0)),     # gamma
                pl.BlockSpec((1, C), lambda i, k: (0, 0)),     # beta
                pl.BlockSpec((C, tk), lambda i, k: (0, k)),    # w1 slab
                pl.BlockSpec((1, tk), lambda i, k: (0, k)),    # b1 slab
                pl.BlockSpec((tk, C), lambda i, k: (k, 0)),    # w2 slab
                pl.BlockSpec((1, C), lambda i, k: (0, 0)),     # b2
            ],
            out_specs=pl.BlockSpec((tm, C), lambda i, k: (i, 0)),
            scratch_shapes=[pltpu.VMEM((tm, C), jnp.float32),   # xn (LayerNorm output)
                            pltpu.VMEM((tm, C), jnp.float32)],  # y accumulator
        ),
        compiler_params=pltpu.CompilerParams(
            dimension_semantics=("parallel", "arbitrary"),
            vmem_limit_bytes=vmem_limit),
    )(x2, gamma, beta, w1, b1, w2, b2)

    return out.reshape(B, S, C)


def _init_params(key, channels, dtype=jnp.float32):
    k1, k2, k3, k4 = jax.random.split(key, 4)
    bound = 1.0 / jnp.sqrt(channels)
    return {
        "ln_gamma": jnp.ones((channels,), dtype),
        "ln_beta": jnp.zeros((channels,), dtype),
        # PyTorch Linear default init: U(-1/sqrt(in), 1/sqrt(in)) for W and b.
        "w1": jax.random.uniform(k1, (channels, channels), dtype, -bound, bound),
        "b1": jax.random.uniform(k2, (channels,), dtype, -bound, bound),
        "w2": jax.random.uniform(k3, (channels, channels), dtype, -bound, bound),
        "b2": jax.random.uniform(k4, (channels,), dtype, -bound, bound),
    }


def _reference(x, p, eps=1e-5):
    mean = jnp.mean(x, axis=-1, keepdims=True)
    var = jnp.mean((x - mean) ** 2, axis=-1, keepdims=True)
    xn = (x - mean) / jnp.sqrt(var + eps) * p["ln_gamma"] + p["ln_beta"]
    h = xn @ p["w1"].T + p["b1"]
    h = jax.nn.gelu(h, approximate=False)
    y = h @ p["w2"].T + p["b2"]
    return xn + y


if __name__ == "__main__":
    key = jax.random.PRNGKey(0)
    kx, kp = jax.random.split(key)

    # Small but representative shapes: C lane-aligned; M = 18 is NOT a multiple of the
    # row tile (exercises the masked partial row tile) and tk=128 < C (exercises the
    # hidden-dim chunked path with 2 weight slabs).
    B, S, C = 2, 9, 256
    x = jax.random.normal(kx, (B, S, C), jnp.float32)
    params = _init_params(kp, C)

    out = jax.block_until_ready(simple_res_block(x, params, tk=128))

    ref = _reference(x, params)
    assert out.shape == (B, S, C)
    assert bool(jnp.all(jnp.isfinite(out)))
    # bf16 MXU inputs (f32 accumulation) vs f32 reference -> loosened tolerance.
    assert jnp.allclose(out, ref, atol=3e-2, rtol=3e-2), "mismatch vs reference"

    print("KERNEL_OK")
</pallas_src>

<mosaic_0001>
module attributes {stable_mosaic.version = 11 : i64} {
  func.func @_resblock_kernel(%arg0: i32, %arg1: i32, %arg2: memref<16x256xf32, #tpu.memory_space<vmem>>, %arg3: memref<1x256xf32, #tpu.memory_space<vmem>>, %arg4: memref<1x256xf32, #tpu.memory_space<vmem>>, %arg5: memref<256x128xbf16, #tpu.memory_space<vmem>>, %arg6: memref<1x128xf32, #tpu.memory_space<vmem>>, %arg7: memref<128x256xbf16, #tpu.memory_space<vmem>>, %arg8: memref<1x256xf32, #tpu.memory_space<vmem>>, %arg9: memref<16x256xf32, #tpu.memory_space<vmem>>, %arg10: memref<16x256xf32, #tpu.memory_space<vmem>>, %arg11: memref<16x256xf32, #tpu.memory_space<vmem>>) attributes {dimension_semantics = [#tpu.dimension_semantics<parallel>, #tpu.dimension_semantics<arbitrary>], iteration_bounds = array<i64: 2, 2>, scalar_prefetch = 0 : i64, scratch_operands = 2 : i64, tpu.core_type = #tpu.core_type<tc>, window_params = [{transform_indices = @transform_0, window_bounds = array<i64: 16, 256>}, {pipeline_mode = #tpu.pipeline_mode<synchronous>, transform_indices = @transform_1, window_bounds = array<i64: 1, 256>}, {pipeline_mode = #tpu.pipeline_mode<synchronous>, transform_indices = @transform_2, window_bounds = array<i64: 1, 256>}, {transform_indices = @transform_3, window_bounds = array<i64: 256, 128>}, {transform_indices = @transform_4, window_bounds = array<i64: 1, 128>}, {transform_indices = @transform_5, window_bounds = array<i64: 128, 256>}, {pipeline_mode = #tpu.pipeline_mode<synchronous>, transform_indices = @transform_6, window_bounds = array<i64: 1, 256>}, {transform_indices = @transform_7, window_bounds = array<i64: 16, 256>}]} {
    %c0_i32 = arith.constant 0 : i32
    %0 = arith.cmpi eq, %arg1, %c0_i32 : i32
    %1 = arith.extui %0 : i1 to i32
    %c0_i32_0 = arith.constant 0 : i32
    %2 = arith.cmpi ne, %1, %c0_i32_0 : i32
    scf.if %2 {
      %c0_17 = arith.constant 0 : index
      %c0_18 = arith.constant 0 : index
      %27 = vector.load %arg2[%c0_17, %c0_18] : memref<16x256xf32, #tpu.memory_space<vmem>>, vector<16x256xf32>
      %cst_19 = arith.constant dense<0.000000e+00> : vector<16xf32>
      %28 = vector.multi_reduction <add>, %27, %cst_19 [1] : vector<16x256xf32> to vector<16xf32>
      %29 = vector.shape_cast %28 : vector<16xf32> to vector<16x1xf32>
      %cst_20 = arith.constant 2.560000e+02 : f32
      %30 = vector.broadcast %cst_20 : f32 to vector<16x1xf32>
      %31 = arith.divf %29, %30 : vector<16x1xf32>
      %32 = vector.broadcast %31 : vector<16x1xf32> to vector<16x256xf32>
      %33 = arith.subf %27, %32 : vector<16x256xf32>
      %34 = arith.mulf %33, %33 : vector<16x256xf32>
      %cst_21 = arith.constant dense<0.000000e+00> : vector<16xf32>
      %35 = vector.multi_reduction <add>, %34, %cst_21 [1] : vector<16x256xf32> to vector<16xf32>
      %36 = vector.shape_cast %35 : vector<16xf32> to vector<16x1xf32>
      %cst_22 = arith.constant 2.560000e+02 : f32
      %37 = vector.broadcast %cst_22 : f32 to vector<16x1xf32>
      %38 = arith.divf %36, %37 : vector<16x1xf32>
      %cst_23 = arith.constant 9.99999974E-6 : f32
      %39 = vector.broadcast %cst_23 : f32 to vector<16x1xf32>
      %40 = arith.addf %38, %39 : vector<16x1xf32>
      %41 = math.rsqrt %40 : vector<16x1xf32>
      %42 = vector.broadcast %41 : vector<16x1xf32> to vector<16x256xf32>
      %43 = arith.mulf %33, %42 : vector<16x256xf32>
      %c0_24 = arith.constant 0 : index
      %c0_25 = arith.constant 0 : index
      %44 = vector.load %arg3[%c0_24, %c0_25] : memref<1x256xf32, #tpu.memory_space<vmem>>, vector<1x256xf32>
      %45 = vector.broadcast %44 : vector<1x256xf32> to vector<16x256xf32>
      %46 = arith.mulf %43, %45 : vector<16x256xf32>
      %c0_26 = arith.constant 0 : index
      %c0_27 = arith.constant 0 : index
      %47 = vector.load %arg4[%c0_26, %c0_27] : memref<1x256xf32, #tpu.memory_space<vmem>>, vector<1x256xf32>
      %48 = vector.broadcast %47 : vector<1x256xf32> to vector<16x256xf32>
      %49 = arith.addf %46, %48 : vector<16x256xf32>
      %c0_28 = arith.constant 0 : index
      %c0_29 = arith.constant 0 : index
      %50 = vector.load %arg10[%c0_28, %c0_29] : memref<16x256xf32, #tpu.memory_space<vmem>>, vector<16x256xf32>
      tpu.vector_store %arg10[%c0_28, %c0_29], %49 {strides = array<i32>} : memref<16x256xf32, #tpu.memory_space<vmem>>, vector<16x256xf32>,
      %cst_30 = arith.constant 0.000000e+00 : f32
      %51 = vector.broadcast %cst_30 : f32 to vector<16x256xf32>
      %c0_31 = arith.constant 0 : index
      %c0_32 = arith.constant 0 : index
      %52 = vector.load %arg11[%c0_31, %c0_32] : memref<16x256xf32, #tpu.memory_space<vmem>>, vector<16x256xf32>
      tpu.vector_store %arg11[%c0_31, %c0_32], %51 {strides = array<i32>} : memref<16x256xf32, #tpu.memory_space<vmem>>, vector<16x256xf32>,
    } else {
    }
    %c0 = arith.constant 0 : index
    %c0_1 = arith.constant 0 : index
    %3 = vector.load %arg10[%c0, %c0_1] : memref<16x256xf32, #tpu.memory_space<vmem>>, vector<16x256xf32>
    %4 = arith.truncf %3 : vector<16x256xf32> to vector<16x256xbf16>
    %c0_2 = arith.constant 0 : index
    %c0_3 = arith.constant 0 : index
    %5 = vector.load %arg5[%c0_2, %c0_3] : memref<256x128xbf16, #tpu.memory_space<vmem>>, vector<256x128xbf16>
    %cst = arith.constant dense<0.000000e+00> : vector<16x128xf32>
    %6 = tpu.matmul %4, %5, %cst {dimension_numbers = #tpu.dot_dimension_numbers<[1], [0], [0], [1], [0, 0, 1, 1], [], []>} : vector<16x256xbf16>, vector<256x128xbf16>, vector<16x128xf32> -> vector<16x128xf32>
    %c0_4 = arith.constant 0 : index
    %c0_5 = arith.constant 0 : index
    %7 = vector.load %arg6[%c0_4, %c0_5] : memref<1x128xf32, #tpu.memory_space<vmem>>, vector<1x128xf32>
    %8 = vector.broadcast %7 : vector<1x128xf32> to vector<16x128xf32>
    %9 = arith.addf %6, %8 : vector<16x128xf32>
    %cst_6 = arith.constant 5.000000e-01 : f32
    %10 = vector.broadcast %cst_6 : f32 to vector<16x128xf32>
    %11 = arith.mulf %10, %9 : vector<16x128xf32>
    %cst_7 = arith.constant 0.707106769 : f32
    %12 = vector.broadcast %cst_7 : f32 to vector<16x128xf32>
    %13 = arith.mulf %9, %12 : vector<16x128xf32>
    %14 = math.erf %13 : vector<16x128xf32>
    %cst_8 = arith.constant 1.000000e+00 : f32
    %15 = vector.broadcast %cst_8 : f32 to vector<16x128xf32>
    %16 = arith.addf %15, %14 : vector<16x128xf32>
    %17 = arith.mulf %11, %16 : vector<16x128xf32>
    %c0_9 = arith.constant 0 : index
    %c0_10 = arith.constant 0 : index
    %18 = vector.load %arg11[%c0_9, %c0_10] : memref<16x256xf32, #tpu.memory_space<vmem>>, vector<16x256xf32>
    %19 = arith.truncf %17 : vector<16x128xf32> to vector<16x128xbf16>
    %c0_11 = arith.constant 0 : index
    %c0_12 = arith.constant 0 : index
    %20 = vector.load %arg7[%c0_11, %c0_12] : memref<128x256xbf16, #tpu.memory_space<vmem>>, vector<128x256xbf16>
    %cst_13 = arith.constant dense<0.000000e+00> : vector<16x256xf32>
    %21 = tpu.matmul %19, %20, %cst_13 {dimension_numbers = #tpu.dot_dimension_numbers<[1], [0], [0], [1], [0, 0, 1, 1], [], []>} : vector<16x128xbf16>, vector<128x256xbf16>, vector<16x256xf32> -> vector<16x256xf32>
    %22 = arith.addf %18, %21 : vector<16x256xf32>
    %c0_14 = arith.constant 0 : index
    %c0_15 = arith.constant 0 : index
    %23 = vector.load %arg11[%c0_14, %c0_15] : memref<16x256xf32, #tpu.memory_space<vmem>>, vector<16x256xf32>
    tpu.vector_store %arg11[%c0_14, %c0_15], %22 {strides = array<i32>} : memref<16x256xf32, #tpu.memory_space<vmem>>, vector<16x256xf32>,
    %c1_i32 = arith.constant 1 : i32
    %24 = arith.cmpi eq, %arg1, %c1_i32 : i32
    %25 = arith.extui %24 : i1 to i32
    %c0_i32_16 = arith.constant 0 : i32
    %26 = arith.cmpi ne, %25, %c0_i32_16 : i32
    scf.if %26 {
      %c0_17 = arith.constant 0 : index
      %c0_18 = arith.constant 0 : index
      %27 = vector.load %arg10[%c0_17, %c0_18] : memref<16x256xf32, #tpu.memory_space<vmem>>, vector<16x256xf32>
      %c0_19 = arith.constant 0 : index
      %c0_20 = arith.constant 0 : index
      %28 = vector.load %arg11[%c0_19, %c0_20] : memref<16x256xf32, #tpu.memory_space<vmem>>, vector<16x256xf32>
      %29 = arith.addf %27, %28 : vector<16x256xf32>
      %c0_21 = arith.constant 0 : index
      %c0_22 = arith.constant 0 : index
      %30 = vector.load %arg8[%c0_21, %c0_22] : memref<1x256xf32, #tpu.memory_space<vmem>>, vector<1x256xf32>
      %31 = vector.broadcast %30 : vector<1x256xf32> to vector<16x256xf32>
      %32 = arith.addf %29, %31 : vector<16x256xf32>
      %c0_23 = arith.constant 0 : index
      %c0_24 = arith.constant 0 : index
      %33 = vector.load %arg9[%c0_23, %c0_24] : memref<16x256xf32, #tpu.memory_space<vmem>>, vector<16x256xf32>
      tpu.vector_store %arg9[%c0_23, %c0_24], %32 {strides = array<i32>} : memref<16x256xf32, #tpu.memory_space<vmem>>, vector<16x256xf32>,
    } else {
    }
    return
  }
  func.func @transform_0(%arg0: i32, %arg1: i32) -> (i32, i32) {
    %c0_i32 = arith.constant 0 : i32
    %c0_i32_0 = arith.constant 0 : i32
    return %arg0, %c0_i32 : i32, i32
  }
  func.func @transform_1(%arg0: i32, %arg1: i32) -> (i32, i32) {
    %c0_i32 = arith.constant 0 : i32
    %c0_i32_0 = arith.constant 0 : i32
    %c0_i32_1 = arith.constant 0 : i32
    return %c0_i32, %c0_i32_0 : i32, i32
  }
  func.func @transform_2(%arg0: i32, %arg1: i32) -> (i32, i32) {
    %c0_i32 = arith.constant 0 : i32
    %c0_i32_0 = arith.constant 0 : i32
    %c0_i32_1 = arith.constant 0 : i32
    return %c0_i32, %c0_i32_0 : i32, i32
  }
  func.func @transform_3(%arg0: i32, %arg1: i32) -> (i32, i32) {
    %c0_i32 = arith.constant 0 : i32
    %c0_i32_0 = arith.constant 0 : i32
    return %c0_i32, %arg1 : i32, i32
  }
  func.func @transform_4(%arg0: i32, %arg1: i32) -> (i32, i32) {
    %c0_i32 = arith.constant 0 : i32
    %c0_i32_0 = arith.constant 0 : i32
    return %c0_i32, %arg1 : i32, i32
  }
  func.func @transform_5(%arg0: i32, %arg1: i32) -> (i32, i32) {
    %c0_i32 = arith.constant 0 : i32
    %c0_i32_0 = arith.constant 0 : i32
    return %arg1, %c0_i32 : i32, i32
  }
  func.func @transform_6(%arg0: i32, %arg1: i32) -> (i32, i32) {
    %c0_i32 = arith.constant 0 : i32
    %c0_i32_0 = arith.constant 0 : i32
    %c0_i32_1 = arith.constant 0 : i32
    return %c0_i32, %c0_i32_0 : i32, i32
  }
  func.func @transform_7(%arg0: i32, %arg1: i32) -> (i32, i32) {
    %c0_i32 = arith.constant 0 : i32
    %c0_i32_0 = arith.constant 0 : i32
    return %arg0, %c0_i32 : i32, i32
  }
}

</mosaic_0001>

<llo_original>
// kernel: tpu_custom_call.1
$region0: #{tpu_custom_call.1}
  #allocation0 [shape = 'u32[]', space=smem, size = 0x4, offset = 0x4, fixed_abs, tag = 'smem constant byte address 0x4 - core index']
  #allocation1 [shape = 'u32[72,128]{1,0:T(1,128)}', space=vmem, size = 0x9000, scoped, tag = 'internal scratch']
  #allocation2 [shape = 'f32[16,256]{1,0:T(8,128)}', space=vmem, size = 0x4000, scoped, tag = 'scratch operand']
  #allocation3 [shape = 'f32[16,256]{1,0:T(8,128)}', space=vmem, size = 0x4000, scoped, tag = 'scratch operand']
  %s0 = inlined_call_operand.hbm [shape: f32[18,256], index: 0, kind: input, shape index: {}]
  %s1 = inlined_call_operand.hbm [shape: f32[1,256], index: 1, kind: input, shape index: {}]
  %s2 = inlined_call_operand.hbm [shape: f32[1,256], index: 2, kind: input, shape index: {}]
  %s3 = inlined_call_operand.hbm [shape: bf16[256,256], index: 3, kind: input, shape index: {}]
  %s4 = inlined_call_operand.vmem [shape: f32[1,256], index: 4, kind: input, shape index: {}]
  %s5 = inlined_call_operand.hbm [shape: bf16[256,256], index: 5, kind: input, shape index: {}]
  %s6 = inlined_call_operand.vmem [shape: f32[1,256], index: 6, kind: input, shape index: {}]
  %s7 = inlined_call_operand.hbm [shape: f32[18,256], index: 7, kind: output, shape index: {}]
  %s8 = sld [smem:[#allocation0]]
  $region89: #{tpu_custom_call.1} parent=0
    _
  %s10 = ssub.s32 1, %s8
  %s11 = scalar_select 0, %s10, %s8
  $region1: #{tpu_custom_call.1} parent=0
    #allocation4 [shape = 'u8[32768]{0}', space=vmem, size = 0x8000, scoped, tag = 'input window, operand 0']
    #allocation5 [shape = 's32[2]{0}', space=sflag, size = 0x8, scoped, tag = 'scoped memory for tpu_custom_call.1']
    #allocation6 [shape = 's32[2]{0}', space=sflag, size = 0x8, scoped, tag = 'scoped memory for tpu_custom_call.1']
    #allocation7 [shape = 'u8[1024]{0}', space=vmem, size = 0x400, scoped, tag = 'input window, operand 1, single buffered']
    #allocation8 [shape = 's32[1]{0}', space=sflag, size = 0x4, scoped, tag = 'scoped memory for tpu_custom_call.1']
    #allocation9 [shape = 'u8[1024]{0}', space=vmem, size = 0x400, scoped, tag = 'input window, operand 2, single buffered']
    #allocation10 [shape = 'u8[131072]{0}', space=vmem, size = 0x20000, scoped, tag = 'input window, operand 3']
    #allocation11 [shape = 's32[2]{0}', space=sflag, size = 0x8, scoped, tag = 'scoped memory for tpu_custom_call.1']
    #allocation12 [shape = 'u8[131072]{0}', space=vmem, size = 0x20000, scoped, tag = 'input window, operand 5']
    #allocation13 [shape = 'u8[32768]{0}', space=vmem, size = 0x8000, scoped, tag = 'output window, operand 0']
    %12 = vsyncpa [#allocation5], 0
    %s13 = scalar_lea.sflag [#allocation5], 1
    %14 = vsyncpa %s13, 0
    %15 = vsyncpa [#allocation8], 0
    %16 = vsyncpa [#allocation11], 0
    %s17 = scalar_lea.sflag [#allocation11], 1
    %18 = vsyncpa %s17, 0
    %19 = vsyncpa [#allocation6], 0
    %s20 = scalar_lea.sflag [#allocation6], 1
    %21 = vsyncpa %s20, 0
    loop: start=0, step=1, limit=6
    $region2: #{tpu_custom_call.1} parent=1 // loop_pre_header
      _
    $region3: #{tpu_custom_call.1} parent=1 // loop_header
      %s23 = sphi 0, %s27
      %p24 = scmp.ge.s32.totalorder %s23, 6
      %s30 = sphi 0, %s42
      %s31 = sphi 0, %s38
      %s32 = sphi 0, %s30
      %s33 = sphi 0, %s31
      %s34 = sphi 0, %s32
      %s35 = sphi 0, %s33
      %s45 = sphi 0, %s47
      %s48 = sphi 0, %s45
      %s49 = sphi 0, %s48
      %s65 = sphi 0, %s49
      %s69 = sphi 0, %s69
      %s71 = sphi 0, %s69
      %s72 = sphi 0, %s71
      %s86 = sphi 0, %s72
      %s90 = sphi 0, %s90
      %s92 = sphi 0, %s90
      %s93 = sphi 0, %s92
      %s107 = sphi 0, %s93
      %s113 = sphi 0, %s115
      %s116 = sphi 0, %s113
      %s117 = sphi 0, %s116
      %s133 = sphi 0, %s117
      %s139 = sphi 0, %s141
      %s142 = sphi 0, %s139
      %s143 = sphi 0, %s142
      %s159 = sphi 0, %s143
      %s165 = sphi 0, %s167
      %s168 = sphi 0, %s165
      %s169 = sphi 0, %s168
      %s185 = sphi 0, %s169
      %s189 = sphi 0, %s189
      %s191 = sphi 0, %s189
      %s192 = sphi 0, %s191
      %s206 = sphi 0, %s192
      %s212 = sphi 0, %s214
      %s215 = sphi 0, %s212
      %s216 = sphi 0, %s215
      %s232 = sphi 0, %s216
    $region4: #{tpu_custom_call.1} parent=1 // loop_header_branch
      %26 = sbr.rel (%p24) target = $region8
    $region5: #{tpu_custom_call.1} parent=1 // loop_body
      %s28 = ssub.s32 %s23, 1
      %s29 = ssub.s32 %s23, 2
      %s36 = sadd.s32 1, %s31
      %p37 = scmp.ge.s32.totalorder %s36, 2
      %s38 = scalar_select %p37, 0, %s36
      %s39 = sadd.s32 1, %s30
      %s40 = scalar_select %p37, %s39, %s30
      %p41 = scmp.ge.s32.totalorder %s40, 2
      %s42 = scalar_select %p41, 0, %s40
      %s43 = ssub.s32 %s30, %s42
      %p44 = scmp.eq.s32.totalorder %s43, 0
      %s46 = sadd.s32 %s45, 1
      %s47 = scalar_select %p44, %s45, %s46
      %p50 = pneg %p44
      %p51 = scmp.eq.s32.totalorder %s23, 3
      %p52 = por %p50, %p51
      %p53 = scmp.ne.s32.totalorder %s45, %s48
      %p54 = scmp.eq.s32.totalorder %s23, 0
      %p55 = por %p53, %p54
      %p56 = scmp.ne.s32.totalorder %s45, %s48
      %p57 = scmp.eq.s32.totalorder %s28, 3
      %p58 = por %p56, %p57
      %p59 = scmp.ne.s32.totalorder %s48, %s49
      %p60 = scmp.eq.s32.totalorder %s28, 0
      %p61 = por %p59, %p60
      %p62 = scmp.ne.s32.totalorder %s48, %s49
      %p63 = scmp.eq.s32.totalorder %s29, 3
      %p64 = por %p62, %p63
      %p66 = scmp.ne.s32.totalorder %s49, %s65
      %p67 = scmp.eq.s32.totalorder %s29, 0
      %p68 = por %p66, %p67
      %s70 = sadd.s32 %s69, 1
      %p73 = scmp.eq.s32.totalorder %s23, 3
      %p74 = scmp.ne.s32.totalorder %s69, %s71
      %p75 = scmp.eq.s32.totalorder %s23, 0
      %p76 = por %p74, %p75
      %p77 = scmp.ne.s32.totalorder %s69, %s71
      %p78 = scmp.eq.s32.totalorder %s28, 3
      %p79 = por %p77, %p78
      %p80 = scmp.ne.s32.totalorder %s71, %s72
      %p81 = scmp.eq.s32.totalorder %s28, 0
      %p82 = por %p80, %p81
      %p83 = scmp.ne.s32.totalorder %s71, %s72
      %p84 = scmp.eq.s32.totalorder %s29, 3
      %p85 = por %p83, %p84
      %p87 = scmp.ne.s32.totalorder %s72, %s86
      %p88 = scmp.eq.s32.totalorder %s29, 0
      %p89 = por %p87, %p88
      %s91 = sadd.s32 %s90, 1
      %p94 = scmp.eq.s32.totalorder %s23, 3
      %p95 = scmp.ne.s32.totalorder %s90, %s92
      %p96 = scmp.eq.s32.totalorder %s23, 0
      %p97 = por %p95, %p96
      %p98 = scmp.ne.s32.totalorder %s90, %s92
      %p99 = scmp.eq.s32.totalorder %s28, 3
      %p100 = por %p98, %p99
      %p101 = scmp.ne.s32.totalorder %s92, %s93
      %p102 = scmp.eq.s32.totalorder %s28, 0
      %p103 = por %p101, %p102
      %p104 = scmp.ne.s32.totalorder %s92, %s93
      %p105 = scmp.eq.s32.totalorder %s29, 3
      %p106 = por %p104, %p105
      %p108 = scmp.ne.s32.totalorder %s93, %s107
      %p109 = scmp.eq.s32.totalorder %s29, 0
      %p110 = por %p108, %p109
      %s111 = ssub.s32 %s31, %s38
      %p112 = scmp.eq.s32.totalorder %s111, 0
      %s114 = sadd.s32 %s113, 1
      %s115 = scalar_select %p112, %s113, %s114
      %p118 = pneg %p112
      %p119 = scmp.eq.s32.totalorder %s23, 3
      %p120 = por %p118, %p119
      %p121 = scmp.ne.s32.totalorder %s113, %s116
      %p122 = scmp.eq.s32.totalorder %s23, 0
      %p123 = por %p121, %p122
      %p124 = scmp.ne.s32.totalorder %s113, %s116
      %p125 = scmp.eq.s32.totalorder %s28, 3
      %p126 = por %p124, %p125
      %p127 = scmp.ne.s32.totalorder %s116, %s117
      %p128 = scmp.eq.s32.totalorder %s28, 0
      %p129 = por %p127, %p128
      %p130 = scmp.ne.s32.totalorder %s116, %s117
      %p131 = scmp.eq.s32.totalorder %s29, 3
      %p132 = por %p130, %p131
      %p134 = scmp.ne.s32.totalorder %s117, %s133
      %p135 = scmp.eq.s32.totalorder %s29, 0
      %p136 = por %p134, %p135
      %s137 = ssub.s32 %s31, %s38
      %p138 = scmp.eq.s32.totalorder %s137, 0
      %s140 = sadd.s32 %s139, 1
      %s141 = scalar_select %p138, %s139, %s140
      %p144 = pneg %p138
      %p145 = scmp.eq.s32.totalorder %s23, 3
      %p146 = por %p144, %p145
      %p147 = scmp.ne.s32.totalorder %s139, %s142
      %p148 = scmp.eq.s32.totalorder %s23, 0
      %p149 = por %p147, %p148
      %p150 = scmp.ne.s32.totalorder %s139, %s142
      %p151 = scmp.eq.s32.totalorder %s28, 3
      %p152 = por %p150, %p151
      %p153 = scmp.ne.s32.totalorder %s142, %s143
      %p154 = scmp.eq.s32.totalorder %s28, 0
      %p155 = por %p153, %p154
      %p156 = scmp.ne.s32.totalorder %s142, %s143
      %p157 = scmp.eq.s32.totalorder %s29, 3
      %p158 = por %p156, %p157
      %p160 = scmp.ne.s32.totalorder %s143, %s159
      %p161 = scmp.eq.s32.totalorder %s29, 0
      %p162 = por %p160, %p161
      %s163 = ssub.s32 %s31, %s38
      %p164 = scmp.eq.s32.totalorder %s163, 0
      %s166 = sadd.s32 %s165, 1
      %s167 = scalar_select %p164, %s165, %s166
      %p170 = pneg %p164
      %p171 = scmp.eq.s32.totalorder %s23, 3
      %p172 = por %p170, %p171
      %p173 = scmp.ne.s32.totalorder %s165, %s168
      %p174 = scmp.eq.s32.totalorder %s23, 0
      %p175 = por %p173, %p174
      %p176 = scmp.ne.s32.totalorder %s165, %s168
      %p177 = scmp.eq.s32.totalorder %s28, 3
      %p178 = por %p176, %p177
      %p179 = scmp.ne.s32.totalorder %s168, %s169
      %p180 = scmp.eq.s32.totalorder %s28, 0
      %p181 = por %p179, %p180
      %p182 = scmp.ne.s32.totalorder %s168, %s169
      %p183 = scmp.eq.s32.totalorder %s29, 3
      %p184 = por %p182, %p183
      %p186 = scmp.ne.s32.totalorder %s169, %s185
      %p187 = scmp.eq.s32.totalorder %s29, 0
      %p188 = por %p186, %p187
      %s190 = sadd.s32 %s189, 1
      %p193 = scmp.eq.s32.totalorder %s23, 3
      %p194 = scmp.ne.s32.totalorder %s189, %s191
      %p195 = scmp.eq.s32.totalorder %s23, 0
      %p196 = por %p194, %p195
      %p197 = scmp.ne.s32.totalorder %s189, %s191
      %p198 = scmp.eq.s32.totalorder %s28, 3
      %p199 = por %p197, %p198
      %p200 = scmp.ne.s32.totalorder %s191, %s192
      %p201 = scmp.eq.s32.totalorder %s28, 0
      %p202 = por %p200, %p201
      %p203 = scmp.ne.s32.totalorder %s191, %s192
      %p204 = scmp.eq.s32.totalorder %s29, 3
      %p205 = por %p203, %p204
      %p207 = scmp.ne.s32.totalorder %s192, %s206
      %p208 = scmp.eq.s32.totalorder %s29, 0
      %p209 = por %p207, %p208
      %s210 = ssub.s32 %s30, %s42
      %p211 = scmp.eq.s32.totalorder %s210, 0
      %s213 = sadd.s32 %s212, 1
      %s214 = scalar_select %p211, %s212, %s213
      %p217 = pneg %p211
      %p218 = scmp.eq.s32.totalorder %s23, 3
      %p219 = por %p217, %p218
      %p220 = scmp.ne.s32.totalorder %s212, %s215
      %p221 = scmp.eq.s32.totalorder %s23, 0
      %p222 = por %p220, %p221
      %p223 = scmp.ne.s32.totalorder %s212, %s215
      %p224 = scmp.eq.s32.totalorder %s28, 3
      %p225 = por %p223, %p224
      %p226 = scmp.ne.s32.totalorder %s215, %s216
      %p227 = scmp.eq.s32.totalorder %s28, 0
      %p228 = por %p226, %p227
      %p229 = scmp.ne.s32.totalorder %s215, %s216
      %p230 = scmp.eq.s32.totalorder %s29, 3
      %p231 = por %p229, %p230
      %p233 = scmp.ne.s32.totalorder %s216, %s232
      %p234 = scmp.eq.s32.totalorder %s29, 0
      %p235 = por %p233, %p234
      %p236 = scmp.le.s32.totalorder 1, %s23
      %p237 = scmp.lt.s32.totalorder %s23, 5
      %p238 = pnand %p236, %p237
      %p239 = pneg %p238
      // Predicated region
      $region9: #{tpu_custom_call.1} parent=5 // pred_check
        _
      $region10: #{tpu_custom_call.1} parent=5 // pred_check_branch
        %241 = sbr.rel (%p238) target = $region12
      $region11: #{tpu_custom_call.1} parent=5 // pred_region
        %s242 = ssub.s32 %s23, 1
        // Predicated region
        $region13: #{tpu_custom_call.1} parent=11 // pred_check
          %p243 = pneg %p82
        $region14: #{tpu_custom_call.1} parent=11 // pred_check_branch
          %245 = sbr.rel (%p243) target = $region16
        $region15: #{tpu_custom_call.1} parent=11 // pred_region
          %247 = vsyncadd [#allocation8], 0
          %s249 = sshll.u32 %s1, 4
          %s250 = int_to_ptr.hbm [resolvable:$true] %s249
          %s251 = sshll.u32 [#allocation7], 4
          %s252 = int_to_ptr.vmem [resolvable:$true] %s251
          %254 = dma.hbm_to_vmem [thread:$0]  %s250, 32, %s252, [#allocation8]
        $region16: #{tpu_custom_call.1} parent=11 // pred_fallthru
          _
        // Predicated region
        $region17: #{tpu_custom_call.1} parent=11 // pred_check
          %p255 = pneg %p103
        $region18: #{tpu_custom_call.1} parent=11 // pred_check_branch
          %257 = sbr.rel (%p255) target = $region20
        $region19: #{tpu_custom_call.1} parent=11 // pred_region
          %259 = vsyncadd [#allocation8], 0
          %s261 = sshll.u32 %s2, 4
          %s262 = int_to_ptr.hbm [resolvable:$true] %s261
          %s263 = sshll.u32 [#allocation9], 4
          %s264 = int_to_ptr.vmem [resolvable:$true] %s263
          %266 = dma.hbm_to_vmem [thread:$0]  %s262, 32, %s264, [#allocation8]
        $region20: #{tpu_custom_call.1} parent=11 // pred_fallthru
          _
        // Predicated region
        $region21: #{tpu_custom_call.1} parent=11 // pred_check
          %p267 = pneg %p202
        $region22: #{tpu_custom_call.1} parent=11 // pred_check_branch
          %269 = sbr.rel (%p267) target = $region24
        $region23: #{tpu_custom_call.1} parent=11 // pred_region
          _
        $region24: #{tpu_custom_call.1} parent=11 // pred_fallthru
          _
      $region12: #{tpu_custom_call.1} parent=5 // pred_fallthru
        _
      %p270 = scmp.lt.s32.totalorder %s23, 4
      // Predicated region
      $region25: #{tpu_custom_call.1} parent=5 // pred_check
        %p271 = pneg %p270
      $region26: #{tpu_custom_call.1} parent=5 // pred_check_branch
        %273 = sbr.rel (%p271) target = $region28
      $region27: #{tpu_custom_call.1} parent=5 // pred_region
        // Predicated region
        $region29: #{tpu_custom_call.1} parent=27 // pred_check
          %p274 = pneg %p55
        $region30: #{tpu_custom_call.1} parent=27 // pred_check_branch
          %276 = sbr.rel (%p274) target = $region32
        $region31: #{tpu_custom_call.1} parent=27 // pred_region
          %s277 = sand.u32 %s45, 1
          %s278 = scalar_lea.sflag [#allocation5], %s277
          %s279 = sand.u32 %s45, 1
          %s280 = smul.addr %s279, 32
          %s281 = scalar_lea.vmem [#allocation4], %s280
          %s282 = smul.u32 2, %s30
          %s283 = ssub.s32 3, %s282
          %p284 = scmp.lt.s32.totalorder %s283, 2
          %s285 = scalar_select %p284, %s283, 2
          %s286 = smul.u32 8, %s285
          %s287 = smul.u32 %s286, 2
          %s288 = ssub.s32 32, %s287
          %s289 = sshll.u32 %s288, 4
          %290 = vsyncadd %s278, %s289
          %p291 = scmp.ne.s32.totalorder 0, %s287
          %s292 = smul.addr %s282, 2
          %s293 = smul.addr %s292, 8
          %s294 = scalar_lea.hbm %s0, %s293
          %s295 = smul.u32 16, %s285
          %s296 = sshll.u32 %s294, 4
          %s297 = int_to_ptr.hbm [resolvable:$true] %s296
          %s298 = sshll.u32 %s281, 4
          %s299 = int_to_ptr.vmem [resolvable:$true] %s298
          %s300 = sshll.u32 %s295, 4
          %304 = dma.hbm_to_vmem [thread:$0]  (%p291), %s297, %s300, %s299, %s278, 256, 256, 16
        $region32: #{tpu_custom_call.1} parent=27 // pred_fallthru
          _
        // Predicated region
        $region33: #{tpu_custom_call.1} parent=27 // pred_check
          %p305 = pneg %p123
        $region34: #{tpu_custom_call.1} parent=27 // pred_check_branch
          %307 = sbr.rel (%p305) target = $region36
        $region35: #{tpu_custom_call.1} parent=27 // pred_region
          %s308 = sand.u32 %s23, 1
          %s309 = scalar_lea.sflag [#allocation11], %s308
          %s310 = sand.u32 %s113, 1
          %s311 = smul.addr %s310, 128
          %s312 = scalar_lea.vmem [#allocation10], %s311
          %314 = vsyncadd %s309, 0
          %s315 = smul.addr %s31, 4
          %s316 = scalar_lea.hbm %s3, %s315
          %s317 = sshll.u32 %s316, 4
          %s318 = int_to_ptr.hbm [resolvable:$true] %s317
          %s319 = sshll.u32 %s312, 4
          %s320 = int_to_ptr.vmem [resolvable:$true] %s319
          %325 = dma.hbm_to_vmem [thread:$0]  %s318, 2048, %s320, %s309, 128, 64, 4
        $region36: #{tpu_custom_call.1} parent=27 // pred_fallthru
          _
        // Predicated region
        $region37: #{tpu_custom_call.1} parent=27 // pred_check
          %p326 = pneg %p149
        $region38: #{tpu_custom_call.1} parent=27 // pred_check_branch
          %328 = sbr.rel (%p326) target = $region40
        $region39: #{tpu_custom_call.1} parent=27 // pred_region
          %p329 = scmp.lt.s32.totalorder %s31, 1
          %s330 = scalar_select %p329, %s31, 1
          %s331 = scalar_lea.vmem %s4, %s330
        $region40: #{tpu_custom_call.1} parent=27 // pred_fallthru
          _
        // Predicated region
        $region41: #{tpu_custom_call.1} parent=27 // pred_check
          %p332 = pneg %p175
        $region42: #{tpu_custom_call.1} parent=27 // pred_check_branch
          %334 = sbr.rel (%p332) target = $region44
        $region43: #{tpu_custom_call.1} parent=27 // pred_region
          %s335 = sand.u32 %s23, 1
          %s336 = scalar_lea.sflag [#allocation11], %s335
          %s337 = sand.u32 %s165, 1
          %s338 = smul.addr %s337, 128
          %s339 = scalar_lea.vmem [#allocation12], %s338
          %s340 = smul.u32 16, %s31
          %342 = vsyncadd %s336, 0
          %s343 = smul.addr %s340, 2
          %s344 = smul.addr %s343, 4
          %s345 = scalar_lea.hbm %s5, %s344
          %s346 = sshll.u32 %s345, 4
          %s347 = int_to_ptr.hbm [resolvable:$true] %s346
          %s348 = sshll.u32 %s339, 4
          %s349 = int_to_ptr.vmem [resolvable:$true] %s348
          %354 = dma.hbm_to_vmem [thread:$0]  %s347, 2048, %s349, %s336, 128, 128, 8
        $region44: #{tpu_custom_call.1} parent=27 // pred_fallthru
          _
      $region28: #{tpu_custom_call.1} parent=5 // pred_fallthru
        _
      %p355 = scmp.le.s32.totalorder 1, %s23
      %p356 = scmp.lt.s32.totalorder %s23, 5
      %p357 = pnand %p355, %p356
      %p358 = pneg %p357
      // Predicated region
      $region45: #{tpu_custom_call.1} parent=5 // pred_check
        _
      $region46: #{tpu_custom_call.1} parent=5 // pred_check_branch
        %360 = sbr.rel (%p357) target = $region48
      $region47: #{tpu_custom_call.1} parent=5 // pred_region
        %s361 = ssub.s32 %s23, 1
        %s362 = sand.u32 %s48, 1
        %s363 = scalar_lea.sflag [#allocation5], %s362
        %s364 = sand.u32 %s48, 1
        %s365 = smul.addr %s364, 32
        %s366 = scalar_lea.vmem [#allocation4], %s365
        // Predicated region
        $region49: #{tpu_custom_call.1} parent=47 // pred_check
          %p367 = pneg %p61
        $region50: #{tpu_custom_call.1} parent=47 // pred_check_branch
          %369 = sbr.rel (%p367) target = $region52
        $region51: #{tpu_custom_call.1} parent=47 // pred_region
          %371 = dma.done %s363, 512
        $region52: #{tpu_custom_call.1} parent=47 // pred_fallthru
          _
        // Predicated region
        $region53: #{tpu_custom_call.1} parent=47 // pred_check
          %p372 = pneg %p82
        $region54: #{tpu_custom_call.1} parent=47 // pred_check_branch
          %374 = sbr.rel (%p372) target = $region56
        $region55: #{tpu_custom_call.1} parent=47 // pred_region
          %376 = dma.done [#allocation8], 32
        $region56: #{tpu_custom_call.1} parent=47 // pred_fallthru
          _
        // Predicated region
        $region57: #{tpu_custom_call.1} parent=47 // pred_check
          %p377 = pneg %p103
        $region58: #{tpu_custom_call.1} parent=47 // pred_check_branch
          %379 = sbr.rel (%p377) target = $region60
        $region59: #{tpu_custom_call.1} parent=47 // pred_region
          %381 = dma.done [#allocation8], 32
        $region60: #{tpu_custom_call.1} parent=47 // pred_fallthru
          _
        %s382 = sand.u32 %s28, 1
        %s383 = scalar_lea.sflag [#allocation11], %s382
        %s384 = sand.u32 %s116, 1
        %s385 = smul.addr %s384, 128
        %s386 = scalar_lea.vmem [#allocation10], %s385
        // Predicated region
        $region61: #{tpu_custom_call.1} parent=47 // pred_check
          %p387 = pneg %p129
        $region62: #{tpu_custom_call.1} parent=47 // pred_check_branch
          %389 = sbr.rel (%p387) target = $region64
        $region63: #{tpu_custom_call.1} parent=47 // pred_region
          %391 = dma.done %s383, 2048
        $region64: #{tpu_custom_call.1} parent=47 // pred_fallthru
          _
        %s392 = sand.u32 %s28, 1
        %s393 = scalar_lea.sflag [#allocation11], %s392
        %s394 = sand.u32 %s168, 1
        %s395 = smul.addr %s394, 128
        %s396 = scalar_lea.vmem [#allocation12], %s395
        // Predicated region
        $region65: #{tpu_custom_call.1} parent=47 // pred_check
          %p397 = pneg %p181
        $region66: #{tpu_custom_call.1} parent=47 // pred_check_branch
          %399 = sbr.rel (%p397) target = $region68
        $region67: #{tpu_custom_call.1} parent=47 // pred_region
          %401 = dma.done %s393, 2048
        $region68: #{tpu_custom_call.1} parent=47 // pred_fallthru
          _
        %s402 = sand.u32 %s48, 1
        %s403 = scalar_lea.sflag [#allocation5], %s402
        %s404 = sand.u32 %s48, 1
        %s405 = smul.addr %s404, 32
        %s406 = scalar_lea.vmem [#allocation4], %s405
        %p407 = pneg %p61
        %p408 = pneg %p58
        %p409 = pneg %p82
        %p410 = pneg %p79
        %p411 = pneg %p103
        %p412 = pneg %p100
        %s413 = sand.u32 %s28, 1
        %s414 = scalar_lea.sflag [#allocation11], %s413
        %s415 = sand.u32 %s116, 1
        %s416 = smul.addr %s415, 128
        %s417 = scalar_lea.vmem [#allocation10], %s416
        %p418 = pneg %p129
        %p419 = pneg %p126
        %p420 = scmp.lt.s32.totalorder %s33, 1
        %s421 = scalar_select %p420, %s33, 1
        %s422 = scalar_lea.vmem %s4, %s421
        %p423 = pneg %p155
        %p424 = pneg %p152
        %s425 = sand.u32 %s28, 1
        %s426 = scalar_lea.sflag [#allocation11], %s425
        %s427 = sand.u32 %s168, 1
        %s428 = smul.addr %s427, 128
        %s429 = scalar_lea.vmem [#allocation12], %s428
        %p430 = pneg %p181
        %p431 = pneg %p178
        %p432 = pneg %p202
        %p433 = pneg %p199
        %p434 = pneg %p228
        %p435 = pneg %p225
        %s436 = sand.u32 %s215, 1
        %s437 = scalar_lea.sflag [#allocation6], %s436
        %s438 = sand.u32 %s215, 1
        %s439 = smul.addr %s438, 32
        %s440 = scalar_lea.vmem [#allocation13], %s439
        %s441 = smul.u32 2, %s32
        %s442 = ssub.s32 3, %s441
        %p443 = scmp.lt.s32.totalorder %s442, 2
        %s444 = scalar_select %p443, %s442, 2
        %s445 = smul.u32 8, %s444
        %s446 = smul.u32 %s445, 2
        %p447 = scmp.lt.s32.totalorder %s33, 1
        %s448 = scalar_select %p447, %s33, 1
        %s449 = scalar_lea.vmem %s4, %s448
        %s450 = smul.u32 16, %s33
        %s451 = smul.u32 2, %s32
        %s452 = ssub.s32 3, %s451
        %p453 = scmp.lt.s32.totalorder %s452, 2
        %s454 = scalar_select %p453, %s452, 2
        %s455 = smul.u32 8, %s454
        %s456 = smul.u32 %s455, 2
        %p457 = scmp.eq.s32.totalorder %s33, 0
        // Predicated region
        $region69: #{tpu_custom_call.1} parent=47 // pred_check
          %p458 = pneg %p457
        $region70: #{tpu_custom_call.1} parent=47 // pred_check_branch
          %460 = sbr.rel (%p458) target = $region72
        $region71: #{tpu_custom_call.1} parent=47 // pred_region
          %v461 = vld [vmem:[%s366] sm:$0xff]
          %v462 = vld [vmem:[%s366 + $0x8] sm:$0xff]
          %v463 = vld [vmem:[%s366 + $0x10] sm:$0xff]
          %v464 = vld [vmem:[%s366 + $0x18] sm:$0xff]
          %v465 = vadd.f32 %v461, %v462
          %466 = vadd.xlane.f32.xlu0 %v465
          %v467 = vpop.xlane.xlu0 %466
          %v468 = vadd.f32 %v463, %v464
          %469 = vadd.xlane.f32.xlu0 %v468
          %v470 = vpop.xlane.xlu0 %469
          %v471 = vrcp.pop 256.0
          %v472 = vmul.f32 256.0, %v471
          %v473 = vsub.f32 1.0, %v472
          %v474 = vmul.f32 %v471, %v473
          %v475 = vadd.f32 %v471, %v474
          %vm476 = vweird.f32 %v471
          %v477 = vsel %vm476, %v471, %v475
          %v478 = vmul.f32 %v467, %v477
          %v479 = vmul.f32 %v470, %v477
          %v480 = vsub.f32 %v461, %v478
          %v481 = vsub.f32 %v462, %v478
          %v482 = vsub.f32 %v463, %v479
          %v483 = vsub.f32 %v464, %v479
          %v484 = vmul.f32 %v480, %v480
          %v485 = vmul.f32 %v481, %v481
          %v486 = vmul.f32 %v482, %v482
          %v487 = vmul.f32 %v483, %v483
          %v488 = vadd.f32 %v484, %v485
          %489 = vadd.xlane.f32.xlu0 %v488
          %v490 = vpop.xlane.xlu0 %489
          %v491 = vadd.f32 %v486, %v487
          %492 = vadd.xlane.f32.xlu0 %v491
          %v493 = vpop.xlane.xlu0 %492
          %v494 = vmul.f32 %v490, %v477
          %v495 = vmul.f32 %v493, %v477
          %v496 = vadd.f32 %v494, 1e-05
          %v497 = vadd.f32 %v495, 1e-05
          %v498 = vrsqrt.pop %v496
          %v499 = vmul.f32 %v498, %v496
          %v500 = vmul.f32 %v499, %v498
          %v501 = vmul.f32 0.5, %v500
          %v502 = vsub.f32 1.5, %v501
          %v503 = vmul.f32 %v498, %v502
          %vm504 = vweird.f32 %v496
          %vm505 = vweird.f32 %v498
          %vm506 = vmor %vm504, %vm505
          %v507 = vsel %vm506, %v498, %v503
          %v508 = vrsqrt.pop %v497
          %v509 = vmul.f32 %v508, %v497
          %v510 = vmul.f32 %v509, %v508
          %v511 = vmul.f32 0.5, %v510
          %v512 = vsub.f32 1.5, %v511
          %v513 = vmul.f32 %v508, %v512
          %vm514 = vweird.f32 %v497
          %vm515 = vweird.f32 %v508
          %vm516 = vmor %vm514, %vm515
          %v517 = vsel %vm516, %v508, %v513
          %v518 = vmul.f32 %v480, %v507
          %v519 = vmul.f32 %v481, %v507
          %v520 = vmul.f32 %v482, %v517
          %v521 = vmul.f32 %v483, %v517
          %v522 = vld [vmem:[#allocation7] sm:$0x3]
          %v524 = vperm.slane %v522, 0
          %v525 = vperm.slane %v522, 1
          %v528 = vmul.f32 %v518, %v524
          %v529 = vmul.f32 %v519, %v525
          %v530 = vmul.f32 %v520, %v524
          %v531 = vmul.f32 %v521, %v525
          %v532 = vld [vmem:[#allocation9] sm:$0x3]
          %v534 = vperm.slane %v532, 0
          %v535 = vperm.slane %v532, 1
          %v538 = vadd.f32 %v528, %v534
          %v539 = vadd.f32 %v529, %v535
          %v540 = vadd.f32 %v530, %v534
          %v541 = vadd.f32 %v531, %v535
          %542 = vst [vmem:[#allocation2] sm:$0xff] %v538
          %543 = vst [vmem:[#allocation2 + $0x8] sm:$0xff] %v539
          %544 = vst [vmem:[#allocation2 + $0x10] sm:$0xff] %v540
          %545 = vst [vmem:[#allocation2 + $0x18] sm:$0xff] %v541
          %546 = vst [vmem:[#allocation3] sm:$0xff] 0.0
          %547 = vst [vmem:[#allocation3 + $0x8] sm:$0xff] 0.0
          %548 = vst [vmem:[#allocation3 + $0x10] sm:$0xff] 0.0
          %549 = vst [vmem:[#allocation3 + $0x18] sm:$0xff] 0.0
        $region72: #{tpu_custom_call.1} parent=47 // pred_fallthru
          _
        %v550 = vld [vmem:[#allocation2] sm:$0xff]
        %v551 = vld [vmem:[#allocation2 + $0x8] sm:$0xff]
        %v552 = vld [vmem:[#allocation2 + $0x10] sm:$0xff]
        %v553 = vld [vmem:[#allocation2 + $0x18] sm:$0xff]
        %v554 = vpack.c.bf16 %v552, %v550
        %v555 = vpack.c.bf16 %v553, %v551
        %v556 = vld [vmem:[%s386] sm:$0xf]
        %v557 = vld [vmem:[%s386 + $0x4] sm:$0xf]
        %v558 = vld [vmem:[%s386 + $0x8] sm:$0xf]
        %v559 = vld [vmem:[%s386 + $0xc] sm:$0xf]
        %v560 = vld [vmem:[%s386 + $0x10] sm:$0xf]
        %v561 = vld [vmem:[%s386 + $0x14] sm:$0xf]
        %v562 = vld [vmem:[%s386 + $0x18] sm:$0xf]
        %v563 = vld [vmem:[%s386 + $0x1c] sm:$0xf]
        %v564 = vld [vmem:[%s386 + $0x20] sm:$0xf]
        %v565 = vld [vmem:[%s386 + $0x24] sm:$0xf]
        %v566 = vld [vmem:[%s386 + $0x28] sm:$0xf]
        %v567 = vld [vmem:[%s386 + $0x2c] sm:$0xf]
        %v568 = vld [vmem:[%s386 + $0x30] sm:$0xf]
        %v569 = vld [vmem:[%s386 + $0x34] sm:$0xf]
        %v570 = vld [vmem:[%s386 + $0x38] sm:$0xf]
        %v571 = vld [vmem:[%s386 + $0x3c] sm:$0xf]
        %v572 = vld [vmem:[%s386 + $0x40] sm:$0xf]
        %v573 = vld [vmem:[%s386 + $0x44] sm:$0xf]
        %v574 = vld [vmem:[%s386 + $0x48] sm:$0xf]
        %v575 = vld [vmem:[%s386 + $0x4c] sm:$0xf]
        %v576 = vld [vmem:[%s386 + $0x50] sm:$0xf]
        %v577 = vld [vmem:[%s386 + $0x54] sm:$0xf]
        %v578 = vld [vmem:[%s386 + $0x58] sm:$0xf]
        %v579 = vld [vmem:[%s386 + $0x5c] sm:$0xf]
        %v580 = vld [vmem:[%s386 + $0x60] sm:$0xf]
        %v581 = vld [vmem:[%s386 + $0x64] sm:$0xf]
        %v582 = vld [vmem:[%s386 + $0x68] sm:$0xf]
        %v583 = vld [vmem:[%s386 + $0x6c] sm:$0xf]
        %v584 = vld [vmem:[%s386 + $0x70] sm:$0xf]
        %v585 = vld [vmem:[%s386 + $0x74] sm:$0xf]
        %v586 = vld [vmem:[%s386 + $0x78] sm:$0xf]
        %v587 = vld [vmem:[%s386 + $0x7c] sm:$0xf]
        %v588 = vld [vmem:[%s449] sm:$0x1]
        %v590 = vperm.slane %v588, 0
        %v624 = vunpack.c.l.b16 %v556
        %v625 = vunpack.c.l.b16 %v557
        %v626 = vunpack.c.l.b16 %v558
        %v627 = vunpack.c.l.b16 %v559
        %v628 = vunpack.c.l.b16 %v560
        %v629 = vunpack.c.l.b16 %v561
        %v630 = vunpack.c.l.b16 %v562
        %v631 = vunpack.c.l.b16 %v563
        %v632 = vunpack.c.l.b16 %v564
        %v633 = vunpack.c.l.b16 %v565
        %v634 = vunpack.c.l.b16 %v566
        %v635 = vunpack.c.l.b16 %v567
        %v636 = vunpack.c.l.b16 %v568
        %v637 = vunpack.c.l.b16 %v569
        %v638 = vunpack.c.l.b16 %v570
        %v639 = vunpack.c.l.b16 %v571
        %v640 = vunpack.c.l.b16 %v572
        %v641 = vunpack.c.l.b16 %v573
        %v642 = vunpack.c.l.b16 %v574
        %v643 = vunpack.c.l.b16 %v575
        %v644 = vunpack.c.l.b16 %v576
        %v645 = vunpack.c.l.b16 %v577
        %v646 = vunpack.c.l.b16 %v578
        %v647 = vunpack.c.l.b16 %v579
        %v648 = vunpack.c.l.b16 %v580
        %v649 = vunpack.c.l.b16 %v581
        %v650 = vunpack.c.l.b16 %v582
        %v651 = vunpack.c.l.b16 %v583
        %v652 = vunpack.c.l.b16 %v584
        %v653 = vunpack.c.l.b16 %v585
        %v654 = vunpack.c.l.b16 %v586
        %v655 = vunpack.c.l.b16 %v587
        %v656 = vpack.c.b16 %v625, %v624
        %v657 = vpack.c.b16 %v627, %v626
        %v658 = vpack.c.b16 %v629, %v628
        %v659 = vpack.c.b16 %v631, %v630
        %v660 = vpack.c.b16 %v633, %v632
        %v661 = vpack.c.b16 %v635, %v634
        %v662 = vpack.c.b16 %v637, %v636
        %v663 = vpack.c.b16 %v639, %v638
        %v664 = vpack.c.b16 %v641, %v640
        %v665 = vpack.c.b16 %v643, %v642
        %v666 = vpack.c.b16 %v645, %v644
        %v667 = vpack.c.b16 %v647, %v646
        %v668 = vpack.c.b16 %v649, %v648
        %v669 = vpack.c.b16 %v651, %v650
        %v670 = vpack.c.b16 %v653, %v652
        %v671 = vpack.c.b16 %v655, %v654
        %688 = vmatpush.bf16.msra.mxu0 %v663
        %689 = vmatpush.bf16.msra.mxu0 %v662
        %690 = vmatpush.bf16.msra.mxu0 %v661
        %691 = vmatpush.bf16.msra.mxu0 %v660
        %692 = vmatpush.bf16.msra.mxu0 %v659
        %693 = vmatpush.bf16.msra.mxu0 %v658
        %694 = vmatpush.bf16.msra.mxu0 %v657
        %695 = vmatpush.bf16.msra.mxu0 %v656
        %696 = vmatmul.bf16.gmra.mxu0 %v554
        %v697 = vpop.f32.mrf.mxu0
        %v698 = vadd.f32 %v590, %v697
        %v699 = vpop.f32.mrf.mxu0
        %v700 = vadd.f32 %v590, %v699
        %701 = vdwg.mxu0
        %702 = vmatpush.bf16.msra.mxu0 %v671
        %703 = vmatpush.bf16.msra.mxu0 %v670
        %704 = vmatpush.bf16.msra.mxu0 %v669
        %705 = vmatpush.bf16.msra.mxu0 %v668
        %706 = vmatpush.bf16.msra.mxu0 %v667
        %707 = vmatpush.bf16.msra.mxu0 %v666
        %708 = vmatpush.bf16.msra.mxu0 %v665
        %709 = vmatpush.bf16.msra.mxu0 %v664
        %710 = vmatmul.bf16.gmra.mxu0 %v555
        %v711 = vpop.f32.mrf.mxu0
        %v712 = vadd.f32 %v698, %v711
        %v713 = vpop.f32.mrf.mxu0
        %v714 = vadd.f32 %v700, %v713
        %715 = vdwg.mxu0
        %v716 = vmul.f32 %v712, 0.5
        %v717 = vmul.f32 %v714, 0.5
        %v718 = vmul.f32 %v712, 0.70710677
        %v719 = vmul.f32 %v714, 0.70710677
        %v720 = vmul.f32 %v718, %v718
        %v721 = vmin.f32 16.0, %v720
        %v722 = vmul.f32 %v721, 2.1237322e-06
        %v723 = vadd.f32 %v722, 0.00028619796
        %v724 = vmul.f32 %v721, %v723
        %v725 = vadd.f32 %v724, 0.0036580483
        %v726 = vmul.f32 %v721, %v725
        %v727 = vadd.f32 %v726, 0.05243302
        %v728 = vmul.f32 %v721, %v727
        %v729 = vadd.f32 %v728, 0.18741608
        %v730 = vmul.f32 %v721, %v729
        %v731 = vadd.f32 %v730, 1.1283791
        %v732 = vmul.f32 %v718, %v731
        %v733 = vmul.f32 %v721, 3.8918573e-05
        %v734 = vadd.f32 %v733, 0.001143296
        %v735 = vmul.f32 %v721, %v734
        %v736 = vadd.f32 %v735, 0.014752088
        %v737 = vmul.f32 %v721, %v736
        %v738 = vadd.f32 %v737, 0.112945676
        %v739 = vmul.f32 %v721, %v738
        %v740 = vadd.f32 %v739, 0.4994258
        %v741 = vmul.f32 %v721, %v740
        %v742 = vadd.f32 %v741, 1.0
        %v743 = vrcp.pop %v742
        %v744 = vmul.f32 %v742, %v743
        %v745 = vsub.f32 1.0, %v744
        %v746 = vmul.f32 %v743, %v745
        %v747 = vadd.f32 %v743, %v746
        %vm748 = vweird.f32 %v742
        %vm749 = vweird.f32 %v743
        %vm750 = vmor %vm748, %vm749
        %v751 = vsel %vm750, %v743, %v747
        %v752 = vand.u32 2147483647, %v742
        %vm753 = vcmp.eq.f32.partialorder %v752, 8.507059e+37
        %v754 = vand.u32 %v742, 2147483648
        %v755 = vor.u32 1.1754944e-38, %v754
        %v756 = vsel %vm753, %v755, %v751
        %v757 = vmul.f32 %v732, %v756
        %v758 = vmin.f32 %v757, 1.0
        %v759 = vmax.f32 %v758, -1.0
        %v760 = vmul.f32 %v719, %v719
        %v761 = vmin.f32 16.0, %v760
        %v762 = vmul.f32 %v761, 2.1237322e-06
        %v763 = vadd.f32 %v762, 0.00028619796
        %v764 = vmul.f32 %v761, %v763
        %v765 = vadd.f32 %v764, 0.0036580483
        %v766 = vmul.f32 %v761, %v765
        %v767 = vadd.f32 %v766, 0.05243302
        %v768 = vmul.f32 %v761, %v767
        %v769 = vadd.f32 %v768, 0.18741608
        %v770 = vmul.f32 %v761, %v769
        %v771 = vadd.f32 %v770, 1.1283791
        %v772 = vmul.f32 %v719, %v771
        %v773 = vmul.f32 %v761, 3.8918573e-05
        %v774 = vadd.f32 %v773, 0.001143296
        %v775 = vmul.f32 %v761, %v774
        %v776 = vadd.f32 %v775, 0.014752088
        %v777 = vmul.f32 %v761, %v776
        %v778 = vadd.f32 %v777, 0.112945676
        %v779 = vmul.f32 %v761, %v778
        %v780 = vadd.f32 %v779, 0.4994258
        %v781 = vmul.f32 %v761, %v780
        %v782 = vadd.f32 %v781, 1.0
        %v783 = vrcp.pop %v782
        %v784 = vmul.f32 %v782, %v783
        %v785 = vsub.f32 1.0, %v784
        %v786 = vmul.f32 %v783, %v785
        %v787 = vadd.f32 %v783, %v786
        %vm788 = vweird.f32 %v782
        %vm789 = vweird.f32 %v783
        %vm790 = vmor %vm788, %vm789
        %v791 = vsel %vm790, %v783, %v787
        %v792 = vand.u32 2147483647, %v782
        %vm793 = vcmp.eq.f32.partialorder %v792, 8.507059e+37
        %v794 = vand.u32 %v782, 2147483648
        %v795 = vor.u32 1.1754944e-38, %v794
        %v796 = vsel %vm793, %v795, %v791
        %v797 = vmul.f32 %v772, %v796
        %v798 = vmin.f32 %v797, 1.0
        %v799 = vmax.f32 %v798, -1.0
        %v800 = vadd.f32 %v759, 1.0
        %v801 = vadd.f32 %v799, 1.0
        %v802 = vmul.f32 %v716, %v800
        %v803 = vmul.f32 %v717, %v801
        %v804 = vld [vmem:[#allocation3] sm:$0xff]
        %v805 = vld [vmem:[#allocation3 + $0x8] sm:$0xff]
        %v806 = vld [vmem:[#allocation3 + $0x10] sm:$0xff]
        %v807 = vld [vmem:[#allocation3 + $0x18] sm:$0xff]
        %v808 = vpack.c.bf16 %v803, %v802
        %v809 = vld [vmem:[%s396] sm:$0xff]
        %v810 = vld [vmem:[%s396 + $0x8] sm:$0xff]
        %v811 = vld [vmem:[%s396 + $0x10] sm:$0xff]
        %v812 = vld [vmem:[%s396 + $0x18] sm:$0xff]
        %v813 = vld [vmem:[%s396 + $0x20] sm:$0xff]
        %v814 = vld [vmem:[%s396 + $0x28] sm:$0xff]
        %v815 = vld [vmem:[%s396 + $0x30] sm:$0xff]
        %v816 = vld [vmem:[%s396 + $0x38] sm:$0xff]
        %v817 = vld [vmem:[%s396 + $0x40] sm:$0xff]
        %v818 = vld [vmem:[%s396 + $0x48] sm:$0xff]
        %v819 = vld [vmem:[%s396 + $0x50] sm:$0xff]
        %v820 = vld [vmem:[%s396 + $0x58] sm:$0xff]
        %v821 = vld [vmem:[%s396 + $0x60] sm:$0xff]
        %v822 = vld [vmem:[%s396 + $0x68] sm:$0xff]
        %v823 = vld [vmem:[%s396 + $0x70] sm:$0xff]
        %v824 = vld [vmem:[%s396 + $0x78] sm:$0xff]
        %v841 = vunpack.c.l.b16 %v809
        %v842 = vunpack.c.h.b16 %v809
        %v843 = vunpack.c.l.b16 %v810
        %v844 = vunpack.c.h.b16 %v810
        %v845 = vunpack.c.l.b16 %v811
        %v846 = vunpack.c.h.b16 %v811
        %v847 = vunpack.c.l.b16 %v812
        %v848 = vunpack.c.h.b16 %v812
        %v849 = vunpack.c.l.b16 %v813
        %v850 = vunpack.c.h.b16 %v813
        %v851 = vunpack.c.l.b16 %v814
        %v852 = vunpack.c.h.b16 %v814
        %v853 = vunpack.c.l.b16 %v815
        %v854 = vunpack.c.h.b16 %v815
        %v855 = vunpack.c.l.b16 %v816
        %v856 = vunpack.c.h.b16 %v816
        %v857 = vunpack.c.l.b16 %v817
        %v858 = vunpack.c.h.b16 %v817
        %v859 = vunpack.c.l.b16 %v818
        %v860 = vunpack.c.h.b16 %v818
        %v861 = vunpack.c.l.b16 %v819
        %v862 = vunpack.c.h.b16 %v819
        %v863 = vunpack.c.l.b16 %v820
        %v864 = vunpack.c.h.b16 %v820
        %v865 = vunpack.c.l.b16 %v821
        %v866 = vunpack.c.h.b16 %v821
        %v867 = vunpack.c.l.b16 %v822
        %v868 = vunpack.c.h.b16 %v822
        %v869 = vunpack.c.l.b16 %v823
        %v870 = vunpack.c.h.b16 %v823
        %v871 = vunpack.c.l.b16 %v824
        %v872 = vunpack.c.h.b16 %v824
        %v873 = vpack.c.b16 %v843, %v841
        %v874 = vpack.c.b16 %v844, %v842
        %v875 = vpack.c.b16 %v847, %v845
        %v876 = vpack.c.b16 %v848, %v846
        %v877 = vpack.c.b16 %v851, %v849
        %v878 = vpack.c.b16 %v852, %v850
        %v879 = vpack.c.b16 %v855, %v853
        %v880 = vpack.c.b16 %v856, %v854
        %v881 = vpack.c.b16 %v859, %v857
        %v882 = vpack.c.b16 %v860, %v858
        %v883 = vpack.c.b16 %v863, %v861
        %v884 = vpack.c.b16 %v864, %v862
        %v885 = vpack.c.b16 %v867, %v865
        %v886 = vpack.c.b16 %v868, %v866
        %v887 = vpack.c.b16 %v871, %v869
        %v888 = vpack.c.b16 %v872, %v870
        %905 = vmatpush.bf16.msra.mxu0 %v887
        %906 = vmatpush.bf16.msra.mxu0 %v885
        %907 = vmatpush.bf16.msra.mxu0 %v883
        %908 = vmatpush.bf16.msra.mxu0 %v881
        %909 = vmatpush.bf16.msra.mxu0 %v879
        %910 = vmatpush.bf16.msra.mxu0 %v877
        %911 = vmatpush.bf16.msra.mxu0 %v875
        %912 = vmatpush.bf16.msra.mxu0 %v873
        %913 = vmatmul.bf16.gmra.mxu0 %v808
        %v914 = vpop.f32.mrf.mxu0
        %v915 = vadd.f32 0.0, %v914
        %v916 = vpop.f32.mrf.mxu0
        %v917 = vadd.f32 0.0, %v916
        %918 = vdwg.mxu0
        %919 = vmatpush.bf16.msra.mxu0 %v888
        %920 = vmatpush.bf16.msra.mxu0 %v886
        %921 = vmatpush.bf16.msra.mxu0 %v884
        %922 = vmatpush.bf16.msra.mxu0 %v882
        %923 = vmatpush.bf16.msra.mxu0 %v880
        %924 = vmatpush.bf16.msra.mxu0 %v878
        %925 = vmatpush.bf16.msra.mxu0 %v876
        %926 = vmatpush.bf16.msra.mxu0 %v874
        %927 = vmatmul.bf16.gmra.mxu0 %v808
        %v928 = vpop.f32.mrf.mxu0
        %v929 = vadd.f32 0.0, %v928
        %v930 = vpop.f32.mrf.mxu0
        %v931 = vadd.f32 0.0, %v930
        %932 = vdwg.mxu0
        %v933 = vadd.f32 %v804, %v915
        %v934 = vadd.f32 %v805, %v929
        %v935 = vadd.f32 %v806, %v917
        %v936 = vadd.f32 %v807, %v931
        %937 = vst [vmem:[#allocation3] sm:$0xff] %v933
        %938 = vst [vmem:[#allocation3 + $0x8] sm:$0xff] %v934
        %939 = vst [vmem:[#allocation3 + $0x10] sm:$0xff] %v935
        %940 = vst [vmem:[#allocation3 + $0x18] sm:$0xff] %v936
        %p941 = scmp.eq.s32.totalorder %s33, 1
        // Predicated region
        $region73: #{tpu_custom_call.1} parent=47 // pred_check
          %p942 = pneg %p941
        $region74: #{tpu_custom_call.1} parent=47 // pred_check_branch
          %944 = sbr.rel (%p942) target = $region76
        $region75: #{tpu_custom_call.1} parent=47 // pred_region
          %v945 = vld [vmem:[#allocation2] sm:$0xff]
          %v946 = vld [vmem:[#allocation2 + $0x8] sm:$0xff]
          %v947 = vld [vmem:[#allocation2 + $0x10] sm:$0xff]
          %v948 = vld [vmem:[#allocation2 + $0x18] sm:$0xff]
          %v949 = vld [vmem:[#allocation3] sm:$0xff]
          %v950 = vld [vmem:[#allocation3 + $0x8] sm:$0xff]
          %v951 = vld [vmem:[#allocation3 + $0x10] sm:$0xff]
          %v952 = vld [vmem:[#allocation3 + $0x18] sm:$0xff]
          %v953 = vadd.f32 %v945, %v949
          %v954 = vadd.f32 %v946, %v950
          %v955 = vadd.f32 %v947, %v951
          %v956 = vadd.f32 %v948, %v952
          %v957 = vld [vmem:[%s6] sm:$0x3]
          %v959 = vperm.slane %v957, 0
          %v960 = vperm.slane %v957, 1
          %v963 = vadd.f32 %v953, %v959
          %v964 = vadd.f32 %v954, %v960
          %v965 = vadd.f32 %v955, %v959
          %v966 = vadd.f32 %v956, %v960
          %967 = vst [vmem:[%s440] sm:$0xff] %v963
          %968 = vst [vmem:[%s440 + $0x8] sm:$0xff] %v964
          %969 = vst [vmem:[%s440 + $0x10] sm:$0xff] %v965
          %970 = vst [vmem:[%s440 + $0x18] sm:$0xff] %v966
        $region76: #{tpu_custom_call.1} parent=47 // pred_fallthru
          _
        %s971 = sand.u32 %s215, 1
        %s972 = scalar_lea.sflag [#allocation6], %s971
        %s973 = sand.u32 %s215, 1
        %s974 = smul.addr %s973, 32
        %s975 = scalar_lea.vmem [#allocation13], %s974
        // Predicated region
        $region77: #{tpu_custom_call.1} parent=47 // pred_check
          %p976 = pneg %p225
        $region78: #{tpu_custom_call.1} parent=47 // pred_check_branch
          %978 = sbr.rel (%p976) target = $region80
        $region79: #{tpu_custom_call.1} parent=47 // pred_region
          %s979 = smul.u32 2, %s32
          %s980 = ssub.s32 3, %s979
          %p981 = scmp.lt.s32.totalorder %s980, 2
          %s982 = scalar_select %p981, %s980, 2
          %s983 = smul.u32 8, %s982
          %s984 = smul.u32 %s983, 2
          %s985 = ssub.s32 32, %s984
          %s986 = sshll.u32 %s985, 4
          %987 = vsyncadd %s972, %s986
          %p988 = scmp.ne.s32.totalorder 0, %s984
          %s989 = smul.addr %s979, 2
          %s990 = smul.addr %s989, 8
          %s991 = scalar_lea.hbm %s7, %s990
          %s992 = smul.u32 16, %s982
          %s993 = sshll.u32 %s975, 4
          %s994 = int_to_ptr.vmem [resolvable:$true] %s993
          %s995 = sshll.u32 %s991, 4
          %s996 = int_to_ptr.hbm [resolvable:$true] %s995
          %s997 = sshll.u32 %s992, 4
          %1001 = dma.vmem_to_hbm [thread:$0]  (%p988), %s994, %s997, %s996, %s972, 256, 256, 16
        $region80: #{tpu_custom_call.1} parent=47 // pred_fallthru
          _
      $region48: #{tpu_custom_call.1} parent=5 // pred_fallthru
        _
      %p1002 = scmp.le.s32.totalorder 2, %s23
      // Predicated region
      $region81: #{tpu_custom_call.1} parent=5 // pred_check
        %p1003 = pneg %p1002
      $region82: #{tpu_custom_call.1} parent=5 // pred_check_branch
        %1005 = sbr.rel (%p1003) target = $region84
      $region83: #{tpu_custom_call.1} parent=5 // pred_region
        %s1006 = ssub.s32 %s23, 2
        // Predicated region
        $region85: #{tpu_custom_call.1} parent=83 // pred_check
          %p1007 = pneg %p231
        $region86: #{tpu_custom_call.1} parent=83 // pred_check_branch
          %1009 = sbr.rel (%p1007) target = $region88
        $region87: #{tpu_custom_call.1} parent=83 // pred_region
          %s1010 = sand.u32 %s216, 1
          %s1011 = scalar_lea.sflag [#allocation6], %s1010
          %s1012 = sand.u32 %s216, 1
          %s1013 = smul.addr %s1012, 32
          %s1014 = scalar_lea.vmem [#allocation13], %s1013
          %1016 = dma.done %s1011, 512
        $region88: #{tpu_custom_call.1} parent=83 // pred_fallthru
          _
      $region84: #{tpu_custom_call.1} parent=5 // pred_fallthru
        _
    $region6: #{tpu_custom_call.1} parent=1 // loop_footer
      %s27 = sadd.s32 1, %s23
    $region7: #{tpu_custom_call.1} parent=1 // loop_footer_branch
      %22 = sbr.rel target = $region3
    $region8: #{tpu_custom_call.1} parent=1 // loop_exit
      _
    %1017 = vsyncpa [#allocation5], 1
    %s1018 = scalar_lea.sflag [#allocation5], 1
    %1019 = vsyncpa %s1018, 1
    %1020 = vsyncpa [#allocation8], 1
    %1021 = vsyncpa [#allocation11], 1
    %s1022 = scalar_lea.sflag [#allocation11], 1
    %1023 = vsyncpa %s1022, 1
    %1024 = vsyncpa [#allocation6], 1
    %s1025 = scalar_lea.sflag [#allocation6], 1
    %1026 = vsyncpa %s1025, 1

</llo_original>
